<compile_context>
chip_gen: v7x
topology: tpu7x:2x2x1
jax: 0.10.0
libtpu: 0.0.40
codegen_flags: <defaults>
</compile_context>

<pallas_src>
import functools

import jax
import jax.numpy as jnp
from jax.experimental import pallas as pl
from jax.experimental.pallas import tpu as pltpu


# -----------------------------------------------------------------------------
# Pallas kernel: materialize diag(noise) as a dense (N, N) matrix, tiled.
# -----------------------------------------------------------------------------
def _diag_block_kernel(noise_ref, cov_ref):
    """One (T, T) tile of the dense diagonal matrix.

    noise_ref: (1, T)  slice of the diagonal for this block-column
    cov_ref  : (T, T)  output tile (square tiles, so block (i, i) holds diag)
    """
    i = pl.program_id(0)
    j = pl.program_id(1)

    # Off-diagonal blocks are pure zeros: keep the body store-only so the
    # kernel stays vst/DMA-writeback bound (no iota/compare/select temporaries).
    @pl.when(i != j)
    def _():
        cov_ref[...] = jnp.zeros_like(cov_ref)

    # Diagonal blocks: place noise[j*T + c] at local position (r == c).
    @pl.when(i == j)
    def _():
        tm, tn = cov_ref.shape
        rows = jax.lax.broadcasted_iota(jnp.int32, (tm, tn), 0)
        cols = jax.lax.broadcasted_iota(jnp.int32, (tm, tn), 1)
        cov_ref[...] = jnp.where(
            rows == cols,
            jnp.broadcast_to(noise_ref[...], (tm, tn)),
            jnp.zeros((), cov_ref.dtype),
        )


def _pick_tile(n_pad, max_tile):
    # Square, lane-dense tiles (multiples of 128). max_tile=512 keeps the
    # double-buffered output tile at 2 MiB f32 — safe within the default
    # scoped-VMEM budget on v5e/v6e and on v7x's smaller 64 MiB VMEM.
    for t in (max_tile, 512, 256, 128):
        if t <= max_tile and n_pad % t == 0:
            return t
    return 128


@functools.partial(jax.jit, static_argnames=("max_tile",))
def _materialize_diag_dense(noise_vec, *, max_tile=512):
    """Dense (N, N) diagonal matrix from a length-N vector via a tiled kernel."""
    n = noise_vec.shape[-1]
    # Lane-dense tiles: round N up to a multiple of 128; padded entries are 0
    # on the diagonal and are sliced off afterwards (tail masking via pad).
    n_pad = ((n + 127) // 128) * 128
    tile = _pick_tile(n_pad, max_tile)
    if n_pad != n:
        noise_vec = jnp.pad(noise_vec, (0, n_pad - n))
    noise2d = noise_vec.reshape(1, n_pad)
    grid = (n_pad // tile, n_pad // tile)

    cov = pl.pallas_call(
        _diag_block_kernel,
        out_shape=jax.ShapeDtypeStruct((n_pad, n_pad), noise_vec.dtype),
        grid=grid,
        in_specs=[pl.BlockSpec((1, tile), lambda i, j: (0, j))],
        out_specs=pl.BlockSpec((tile, tile), lambda i, j: (i, j)),
        compiler_params=pltpu.CompilerParams(
            # Tiles are fully independent: let megacore (v7x: 2 TCs) split the grid.
            dimension_semantics=("parallel", "parallel"),
        ),
    )(noise2d)

    if n_pad != n:
        cov = cov[:n, :n]
    return cov


# -----------------------------------------------------------------------------
# Lazy operator wrappers (analogues of linear_operator Diag/Zero operators).
# -----------------------------------------------------------------------------
class DiagLinearOperatorPallas:
    """Lazy diagonal operator: stores only the length-N diagonal."""

    def __init__(self, diag):
        self._diag = diag

    @property
    def shape(self):
        n = self._diag.shape[-1]
        return self._diag.shape[:-1] + (n, n)

    def diagonal(self):
        return self._diag

    def to_dense(self, max_tile=512):
        # On-demand dense materialization (tiled Pallas kernel).
        return _materialize_diag_dense(self._diag, max_tile=max_tile)

    def matmul(self, rhs):
        # Diagonal matmul never needs the dense form.
        return self._diag[..., :, None] * rhs


class ZeroLinearOperatorPallas:
    """Lazy zero operator — no dense HBM traffic unless explicitly requested."""

    def __init__(self, shape, dtype):
        self._shape = tuple(shape)
        self._dtype = dtype

    def diagonal(self):
        return jnp.zeros(self._shape[-1:], self._dtype)

    def to_dense(self):
        n = self._shape[-1]
        return jnp.zeros((n, n), self._dtype)


# -----------------------------------------------------------------------------
# FixedNoise module port.
# -----------------------------------------------------------------------------
def _min_fixed_noise(dtype):
    # mirrors gpytorch settings.min_fixed_noise
    dtype = jnp.dtype(dtype)
    if dtype == jnp.dtype(jnp.float64):
        # TODO(synk): f64 is not supported by Pallas TPU kernels; only the
        # eager clamp below would ever touch this branch.
        return 1e-6
    if dtype in (jnp.dtype(jnp.float16), jnp.dtype(jnp.bfloat16)):
        return 1e-3
    return 1e-4


class FixedNoisePallas:
    """JAX/Pallas port of gpytorch FixedNoise noise model."""

    def __init__(self, noise):
        self.min_noise = _min_fixed_noise(noise.dtype)
        # Like the PyTorch module: clamp once at construction.  A plain
        # jnp.maximum beats a Pallas launch for an O(N) elementwise op.
        self.noise = jnp.maximum(noise, jnp.asarray(self.min_noise, noise.dtype))

    def forward(self, *params, shape=None, noise=None, **kwargs):
        if shape is None:
            p = params[0] if isinstance(params[0], jnp.ndarray) else params[0][0]
            shape = p.shape if len(p.shape) == 1 else p.shape[:-1]
        if noise is not None:
            return DiagLinearOperatorPallas(noise)          # explicit override, no clamp
        elif shape[-1] == self.noise.shape[-1]:
            return DiagLinearOperatorPallas(self.noise)
        else:
            return ZeroLinearOperatorPallas(shape, self.noise.dtype)

    __call__ = forward


if __name__ == "__main__":
    key = jax.random.PRNGKey(0)
    k_noise, k_x, k_override, k_rag = jax.random.split(key, 4)

    # N = 384 -> 3x3 grid of 128x128 tiles: exercises off-diagonal (zero) blocks.
    N, D = 384, 8
    noise = jax.random.uniform(k_noise, (N,), jnp.float32, minval=0.0, maxval=0.2)
    noise = noise.at[:4].set(1e-6)          # exercises the clamp path
    x = jax.random.normal(k_x, (N, D), jnp.float32)

    model = FixedNoisePallas(noise)
    expected_diag = jnp.maximum(noise, 1e-4)

    # Branch 1: shape inferred from params, matches noise length.
    op = model(x)
    cov = op.to_dense()
    jax.block_until_ready(cov)
    assert jnp.allclose(op.diagonal(), expected_diag)
    assert jnp.allclose(cov, jnp.diag(expected_diag))

    # Branch 2: explicit noise override (no clamping).
    override = jax.random.uniform(k_override, (N,), jnp.float32, minval=1e-6, maxval=1.0)
    op_o = model(x, noise=override)
    cov_o = op_o.to_dense()
    jax.block_until_ready(cov_o)
    assert jnp.allclose(op_o.diagonal(), override)
    assert jnp.allclose(cov_o, jnp.diag(override))

    # Branch 3: shape mismatch -> lazy zero operator (no dense materialization in forward).
    op_z = model(x, shape=(N // 2,))
    assert isinstance(op_z, ZeroLinearOperatorPallas)
    assert not jnp.any(op_z.to_dense())

    # Ragged N (not a multiple of 128): pad-to-128 + slice path of the kernel.
    n_rag = 200
    rag = jax.random.uniform(k_rag, (n_rag,), jnp.float32, minval=1e-3, maxval=1.0)
    cov_r = DiagLinearOperatorPallas(rag).to_dense()
    jax.block_until_ready(cov_r)
    assert cov_r.shape == (n_rag, n_rag)
    assert jnp.allclose(cov_r, jnp.diag(rag))

    print("KERNEL_OK")
</pallas_src>

<mosaic_0001>
module attributes {stable_mosaic.version = 11 : i64} {
  func.func @_diag_block_kernel(%arg0: i32, %arg1: i32, %arg2: memref<1x128xf32, #tpu.memory_space<vmem>>, %arg3: memref<128x128xf32, #tpu.memory_space<vmem>>) attributes {dimension_semantics = [#tpu.dimension_semantics<parallel>, #tpu.dimension_semantics<parallel>], iteration_bounds = array<i64: 3, 3>, scalar_prefetch = 0 : i64, scratch_operands = 0 : i64, tpu.core_type = #tpu.core_type<tc>, window_params = [{transform_indices = @transform_0, window_bounds = array<i64: 1, 128>}, {transform_indices = @transform_1, window_bounds = array<i64: 128, 128>}]} {
    %0 = arith.cmpi ne, %arg0, %arg1 : i32
    %1 = arith.extui %0 : i1 to i32
    %c0_i32 = arith.constant 0 : i32
    %2 = arith.cmpi ne, %1, %c0_i32 : i32
    scf.if %2 {
      %cst = arith.constant 0.000000e+00 : f32
      %6 = vector.broadcast %cst : f32 to vector<128x128xf32>
      %c0 = arith.constant 0 : index
      %c0_1 = arith.constant 0 : index
      %7 = vector.load %arg3[%c0, %c0_1] : memref<128x128xf32, #tpu.memory_space<vmem>>, vector<128x128xf32>
      tpu.vector_store %arg3[%c0, %c0_1], %6 {strides = array<i32>} : memref<128x128xf32, #tpu.memory_space<vmem>>, vector<128x128xf32>,
    } else {
    }
    %3 = arith.cmpi eq, %arg0, %arg1 : i32
    %4 = arith.extui %3 : i1 to i32
    %c0_i32_0 = arith.constant 0 : i32
    %5 = arith.cmpi ne, %4, %c0_i32_0 : i32
    scf.if %5 {
      %6 = tpu.iota {dimensions = array<i32: 0>} : vector<128x128xi32>
      %7 = tpu.iota {dimensions = array<i32: 1>} : vector<128x128xi32>
      %8 = arith.cmpi eq, %6, %7 : vector<128x128xi32>
      %c0 = arith.constant 0 : index
      %c0_1 = arith.constant 0 : index
      %9 = vector.load %arg2[%c0, %c0_1] : memref<1x128xf32, #tpu.memory_space<vmem>>, vector<1x128xf32>
      %10 = vector.shape_cast %9 : vector<1x128xf32> to vector<1x128xf32>
      %11 = vector.broadcast %10 : vector<1x128xf32> to vector<128x128xf32>
      %cst = arith.constant 0.000000e+00 : f32
      %12 = vector.broadcast %cst : f32 to vector<128x128xf32>
      %13 = arith.select %8, %11, %12 : vector<128x128xi1>, vector<128x128xf32>
      %c0_2 = arith.constant 0 : index
      %c0_3 = arith.constant 0 : index
      %14 = vector.load %arg3[%c0_2, %c0_3] : memref<128x128xf32, #tpu.memory_space<vmem>>, vector<128x128xf32>
      tpu.vector_store %arg3[%c0_2, %c0_3], %13 {strides = array<i32>} : memref<128x128xf32, #tpu.memory_space<vmem>>, vector<128x128xf32>,
    } else {
    }
    return
  }
  func.func @transform_0(%arg0: i32, %arg1: i32) -> (i32, i32) {
    %c0_i32 = arith.constant 0 : i32
    %c0_i32_0 = arith.constant 0 : i32
    return %c0_i32, %arg1 : i32, i32
  }
  func.func @transform_1(%arg0: i32, %arg1: i32) -> (i32, i32) {
    %c0_i32 = arith.constant 0 : i32
    return %arg0, %arg1 : i32, i32
  }
}

</mosaic_0001>

<llo_original>
// kernel: _materialize_diag_dense.1
$region0: #{_materialize_diag_dense.1}
  #allocation0 [shape = 'u32[]', space=smem, size = 0x4, offset = 0x4, fixed_abs, tag = 'smem constant byte address 0x4 - core index']
  #allocation1 [shape = 'u32[144,128]{1,0:T(1,128)}', space=vmem, size = 0x12000, scoped, tag = 'internal scratch']
  %s0 = inlined_call_operand.vmem [shape: f32[1,384], index: 0, kind: input, shape index: {}]
  %s1 = inlined_call_operand.hbm [shape: f32[384,384], index: 1, kind: output, shape index: {}]
  %s2 = sld [smem:[#allocation0]]
  $region45: #{_materialize_diag_dense.1} parent=0
    _
  %s4 = ssub.s32 1, %s2
  %s5 = scalar_select 0, %s4, %s2
  $region1: #{_materialize_diag_dense.1} parent=0
    #allocation2 [shape = 'u8[131072]{0}', space=vmem, size = 0x20000, scoped, tag = 'output window, operand 0']
    #allocation3 [shape = 's32[2]{0}', space=sflag, size = 0x8, scoped, tag = 'scoped memory for _materialize_diag_dense.1']
    %6 = vsyncpa [#allocation3], 0
    %s7 = scalar_lea.sflag [#allocation3], 1
    %8 = vsyncpa %s7, 0
    loop: start=0, step=1, limit=11
    $region2: #{_materialize_diag_dense.1} parent=1 // loop_pre_header
      _
    $region3: #{_materialize_diag_dense.1} parent=1 // loop_header
      %s10 = sphi 0, %s14
      %p11 = scmp.ge.s32.totalorder %s10, 11
      %s17 = sphi 0, %s29
      %s18 = sphi 0, %s25
      %s19 = sphi 0, %s17
      %s20 = sphi 0, %s18
      %s21 = sphi 0, %s19
      %s22 = sphi 0, %s20
      %s32 = sphi 0, %s34
      %s35 = sphi 0, %s32
      %s36 = sphi 0, %s35
      %s52 = sphi 0, %s36
      %s60 = sphi 0, %s62
      %s63 = sphi 0, %s60
      %s64 = sphi 0, %s63
      %s80 = sphi 0, %s64
    $region4: #{_materialize_diag_dense.1} parent=1 // loop_header_branch
      %13 = sbr.rel (%p11) target = $region8
    $region5: #{_materialize_diag_dense.1} parent=1 // loop_body
      %s15 = ssub.s32 %s10, 1
      %s16 = ssub.s32 %s10, 2
      %s23 = sadd.s32 1, %s18
      %p24 = scmp.ge.s32.totalorder %s23, 3
      %s25 = scalar_select %p24, 0, %s23
      %s26 = sadd.s32 1, %s17
      %s27 = scalar_select %p24, %s26, %s17
      %p28 = scmp.ge.s32.totalorder %s27, 3
      %s29 = scalar_select %p28, 0, %s27
      %s30 = ssub.s32 %s18, %s25
      %p31 = scmp.eq.s32.totalorder %s30, 0
      %s33 = sadd.s32 %s32, 1
      %s34 = scalar_select %p31, %s32, %s33
      %p37 = pneg %p31
      %p38 = scmp.eq.s32.totalorder %s10, 8
      %p39 = por %p37, %p38
      %p40 = scmp.ne.s32.totalorder %s32, %s35
      %p41 = scmp.eq.s32.totalorder %s10, 0
      %p42 = por %p40, %p41
      %p43 = scmp.ne.s32.totalorder %s32, %s35
      %p44 = scmp.eq.s32.totalorder %s15, 8
      %p45 = por %p43, %p44
      %p46 = scmp.ne.s32.totalorder %s35, %s36
      %p47 = scmp.eq.s32.totalorder %s15, 0
      %p48 = por %p46, %p47
      %p49 = scmp.ne.s32.totalorder %s35, %s36
      %p50 = scmp.eq.s32.totalorder %s16, 8
      %p51 = por %p49, %p50
      %p53 = scmp.ne.s32.totalorder %s36, %s52
      %p54 = scmp.eq.s32.totalorder %s16, 0
      %p55 = por %p53, %p54
      %s56 = ssub.s32 %s17, %s29
      %s57 = ssub.s32 %s18, %s25
      %s58 = sor.u32 %s56, %s57
      %p59 = scmp.eq.s32.totalorder %s58, 0
      %s61 = sadd.s32 %s60, 1
      %s62 = scalar_select %p59, %s60, %s61
      %p65 = pneg %p59
      %p66 = scmp.eq.s32.totalorder %s10, 8
      %p67 = por %p65, %p66
      %p68 = scmp.ne.s32.totalorder %s60, %s63
      %p69 = scmp.eq.s32.totalorder %s10, 0
      %p70 = por %p68, %p69
      %p71 = scmp.ne.s32.totalorder %s60, %s63
      %p72 = scmp.eq.s32.totalorder %s15, 8
      %p73 = por %p71, %p72
      %p74 = scmp.ne.s32.totalorder %s63, %s64
      %p75 = scmp.eq.s32.totalorder %s15, 0
      %p76 = por %p74, %p75
      %p77 = scmp.ne.s32.totalorder %s63, %s64
      %p78 = scmp.eq.s32.totalorder %s16, 8
      %p79 = por %p77, %p78
      %p81 = scmp.ne.s32.totalorder %s64, %s80
      %p82 = scmp.eq.s32.totalorder %s16, 0
      %p83 = por %p81, %p82
      %p84 = scmp.le.s32.totalorder 1, %s10
      %p85 = scmp.lt.s32.totalorder %s10, 10
      %p86 = pnand %p84, %p85
      %p87 = pneg %p86
      // Predicated region
      $region9: #{_materialize_diag_dense.1} parent=5 // pred_check
        _
      $region10: #{_materialize_diag_dense.1} parent=5 // pred_check_branch
        %89 = sbr.rel (%p86) target = $region12
      $region11: #{_materialize_diag_dense.1} parent=5 // pred_region
        %s90 = ssub.s32 %s10, 1
      $region12: #{_materialize_diag_dense.1} parent=5 // pred_fallthru
        _
      %p91 = scmp.lt.s32.totalorder %s10, 9
      // Predicated region
      $region13: #{_materialize_diag_dense.1} parent=5 // pred_check
        %p92 = pneg %p91
      $region14: #{_materialize_diag_dense.1} parent=5 // pred_check_branch
        %94 = sbr.rel (%p92) target = $region16
      $region15: #{_materialize_diag_dense.1} parent=5 // pred_region
        // Predicated region
        $region17: #{_materialize_diag_dense.1} parent=15 // pred_check
          %p95 = pneg %p42
        $region18: #{_materialize_diag_dense.1} parent=15 // pred_check_branch
          %97 = sbr.rel (%p95) target = $region20
        $region19: #{_materialize_diag_dense.1} parent=15 // pred_region
          %p98 = scmp.lt.s32.totalorder %s18, 2
          %s99 = scalar_select %p98, %s18, 2
          %s100 = scalar_lea.vmem %s0, %s99
        $region20: #{_materialize_diag_dense.1} parent=15 // pred_fallthru
          _
      $region16: #{_materialize_diag_dense.1} parent=5 // pred_fallthru
        _
      %p101 = scmp.le.s32.totalorder 1, %s10
      %p102 = scmp.lt.s32.totalorder %s10, 10
      %p103 = pnand %p101, %p102
      %p104 = pneg %p103
      // Predicated region
      $region21: #{_materialize_diag_dense.1} parent=5 // pred_check
        _
      $region22: #{_materialize_diag_dense.1} parent=5 // pred_check_branch
        %106 = sbr.rel (%p103) target = $region24
      $region23: #{_materialize_diag_dense.1} parent=5 // pred_region
        %s107 = ssub.s32 %s10, 1
        %p108 = scmp.lt.s32.totalorder %s20, 2
        %s109 = scalar_select %p108, %s20, 2
        %s110 = scalar_lea.vmem %s0, %s109
        %p111 = pneg %p48
        %p112 = pneg %p45
        %p113 = pneg %p76
        %p114 = pneg %p73
        %s115 = sand.u32 %s63, 1
        %s116 = scalar_lea.sflag [#allocation3], %s115
        %s117 = sand.u32 %s63, 1
        %s118 = smul.addr %s117, 128
        %s119 = scalar_lea.vmem [#allocation2], %s118
        %p120 = scmp.lt.s32.totalorder %s20, 2
        %s121 = scalar_select %p120, %s20, 2
        %s122 = scalar_lea.vmem %s0, %s121
        %s123 = smul.u32 16, %s19
        %p124 = scmp.ne.s32.totalorder %s19, %s20
        // Predicated region
        $region25: #{_materialize_diag_dense.1} parent=23 // pred_check
          %p125 = pneg %p124
        $region26: #{_materialize_diag_dense.1} parent=23 // pred_check_branch
          %127 = sbr.rel (%p125) target = $region28
        $region27: #{_materialize_diag_dense.1} parent=23 // pred_region
          %128 = vst [vmem:[%s119] sm:$0xff] 0.0
          %129 = vst [vmem:[%s119 + $0x8] sm:$0xff] 0.0
          %130 = vst [vmem:[%s119 + $0x10] sm:$0xff] 0.0
          %131 = vst [vmem:[%s119 + $0x18] sm:$0xff] 0.0
          %132 = vst [vmem:[%s119 + $0x20] sm:$0xff] 0.0
          %133 = vst [vmem:[%s119 + $0x28] sm:$0xff] 0.0
          %134 = vst [vmem:[%s119 + $0x30] sm:$0xff] 0.0
          %135 = vst [vmem:[%s119 + $0x38] sm:$0xff] 0.0
          %136 = vst [vmem:[%s119 + $0x40] sm:$0xff] 0.0
          %137 = vst [vmem:[%s119 + $0x48] sm:$0xff] 0.0
          %138 = vst [vmem:[%s119 + $0x50] sm:$0xff] 0.0
          %139 = vst [vmem:[%s119 + $0x58] sm:$0xff] 0.0
          %140 = vst [vmem:[%s119 + $0x60] sm:$0xff] 0.0
          %141 = vst [vmem:[%s119 + $0x68] sm:$0xff] 0.0
          %142 = vst [vmem:[%s119 + $0x70] sm:$0xff] 0.0
          %143 = vst [vmem:[%s119 + $0x78] sm:$0xff] 0.0
        $region28: #{_materialize_diag_dense.1} parent=23 // pred_fallthru
          _
        %p144 = scmp.eq.s32.totalorder %s19, %s20
        // Predicated region
        $region29: #{_materialize_diag_dense.1} parent=23 // pred_check
          %p145 = pneg %p144
        $region30: #{_materialize_diag_dense.1} parent=23 // pred_check_branch
          %147 = sbr.rel (%p145) target = $region32
        $region31: #{_materialize_diag_dense.1} parent=23 // pred_region
          %v148 = vlaneseq
          %v149 = vshrl.u32 %v148, 7
          %v150 = vadd.s32 %v149, 8
          %v151 = vadd.s32 %v149, 16
          %v152 = vadd.s32 %v149, 24
          %v153 = vadd.s32 %v149, 32
          %v154 = vadd.s32 %v149, 40
          %v155 = vadd.s32 %v149, 48
          %v156 = vadd.s32 %v149, 56
          %v157 = vadd.s32 %v149, 64
          %v158 = vadd.s32 %v149, 72
          %v159 = vadd.s32 %v149, 80
          %v160 = vadd.s32 %v149, 88
          %v161 = vadd.s32 %v149, 96
          %v162 = vadd.s32 %v149, 104
          %v163 = vadd.s32 %v149, 112
          %v164 = vadd.s32 %v149, 120
          %v165 = vlaneseq
          %v166 = vand.u32 %v165, 127
          %vm167 = vcmp.eq.s32.totalorder %v149, %v166
          %vm168 = vcmp.eq.s32.totalorder %v150, %v166
          %vm169 = vcmp.eq.s32.totalorder %v151, %v166
          %vm170 = vcmp.eq.s32.totalorder %v152, %v166
          %vm171 = vcmp.eq.s32.totalorder %v153, %v166
          %vm172 = vcmp.eq.s32.totalorder %v154, %v166
          %vm173 = vcmp.eq.s32.totalorder %v155, %v166
          %vm174 = vcmp.eq.s32.totalorder %v156, %v166
          %vm175 = vcmp.eq.s32.totalorder %v157, %v166
          %vm176 = vcmp.eq.s32.totalorder %v158, %v166
          %vm177 = vcmp.eq.s32.totalorder %v159, %v166
          %vm178 = vcmp.eq.s32.totalorder %v160, %v166
          %vm179 = vcmp.eq.s32.totalorder %v161, %v166
          %vm180 = vcmp.eq.s32.totalorder %v162, %v166
          %vm181 = vcmp.eq.s32.totalorder %v163, %v166
          %vm182 = vcmp.eq.s32.totalorder %v164, %v166
          %v183 = vld [vmem:[%s122] sm:$0x1]
          %v185 = vlaneseq
          %v186 = vshrl.u32 %v185, 7
          %v187 = vsub.s32 0, %v186
          %v188 = vrot.slane %v183, %v187
          %v190 = vsel %vm167, %v188, 0.0
          %v191 = vsel %vm168, %v188, 0.0
          %v192 = vsel %vm169, %v188, 0.0
          %v193 = vsel %vm170, %v188, 0.0
          %v194 = vsel %vm171, %v188, 0.0
          %v195 = vsel %vm172, %v188, 0.0
          %v196 = vsel %vm173, %v188, 0.0
          %v197 = vsel %vm174, %v188, 0.0
          %v198 = vsel %vm175, %v188, 0.0
          %v199 = vsel %vm176, %v188, 0.0
          %v200 = vsel %vm177, %v188, 0.0
          %v201 = vsel %vm178, %v188, 0.0
          %v202 = vsel %vm179, %v188, 0.0
          %v203 = vsel %vm180, %v188, 0.0
          %v204 = vsel %vm181, %v188, 0.0
          %v205 = vsel %vm182, %v188, 0.0
          %206 = vst [vmem:[%s119] sm:$0xff] %v190
          %207 = vst [vmem:[%s119 + $0x8] sm:$0xff] %v191
          %208 = vst [vmem:[%s119 + $0x10] sm:$0xff] %v192
          %209 = vst [vmem:[%s119 + $0x18] sm:$0xff] %v193
          %210 = vst [vmem:[%s119 + $0x20] sm:$0xff] %v194
          %211 = vst [vmem:[%s119 + $0x28] sm:$0xff] %v195
          %212 = vst [vmem:[%s119 + $0x30] sm:$0xff] %v196
          %213 = vst [vmem:[%s119 + $0x38] sm:$0xff] %v197
          %214 = vst [vmem:[%s119 + $0x40] sm:$0xff] %v198
          %215 = vst [vmem:[%s119 + $0x48] sm:$0xff] %v199
          %216 = vst [vmem:[%s119 + $0x50] sm:$0xff] %v200
          %217 = vst [vmem:[%s119 + $0x58] sm:$0xff] %v201
          %218 = vst [vmem:[%s119 + $0x60] sm:$0xff] %v202
          %219 = vst [vmem:[%s119 + $0x68] sm:$0xff] %v203
          %220 = vst [vmem:[%s119 + $0x70] sm:$0xff] %v204
          %221 = vst [vmem:[%s119 + $0x78] sm:$0xff] %v205
        $region32: #{_materialize_diag_dense.1} parent=23 // pred_fallthru
          _
        %s222 = sand.u32 %s63, 1
        %s223 = scalar_lea.sflag [#allocation3], %s222
        %s224 = sand.u32 %s63, 1
        %s225 = smul.addr %s224, 128
        %s226 = scalar_lea.vmem [#allocation2], %s225
        // Predicated region
        $region33: #{_materialize_diag_dense.1} parent=23 // pred_check
          %p227 = pneg %p73
        $region34: #{_materialize_diag_dense.1} parent=23 // pred_check_branch
          %229 = sbr.rel (%p227) target = $region36
        $region35: #{_materialize_diag_dense.1} parent=23 // pred_region
          %s230 = smul.u32 16, %s19
          %s232 = ssub.s32 2048, 2048
          %233 = vsyncadd %s223, %s232
          %s234 = smul.addr %s230, 3
          %s235 = sadd.s32 %s20, %s234
          %s236 = smul.addr %s235, 128
          %s237 = scalar_lea.hbm %s1, %s236
          %s238 = sshll.u32 %s226, 4
          %s239 = int_to_ptr.vmem [resolvable:$true] %s238
          %244 = dma.vmem_to_hbm [thread:$0]  %s239, 2048, %s237, %s223, 128, 384, 8
        $region36: #{_materialize_diag_dense.1} parent=23 // pred_fallthru
          _
      $region24: #{_materialize_diag_dense.1} parent=5 // pred_fallthru
        _
      %p245 = scmp.le.s32.totalorder 2, %s10
      // Predicated region
      $region37: #{_materialize_diag_dense.1} parent=5 // pred_check
        %p246 = pneg %p245
      $region38: #{_materialize_diag_dense.1} parent=5 // pred_check_branch
        %248 = sbr.rel (%p246) target = $region40
      $region39: #{_materialize_diag_dense.1} parent=5 // pred_region
        %s249 = ssub.s32 %s10, 2
        // Predicated region
        $region41: #{_materialize_diag_dense.1} parent=39 // pred_check
          %p250 = pneg %p79
        $region42: #{_materialize_diag_dense.1} parent=39 // pred_check_branch
          %252 = sbr.rel (%p250) target = $region44
        $region43: #{_materialize_diag_dense.1} parent=39 // pred_region
          %s253 = sand.u32 %s64, 1
          %s254 = scalar_lea.sflag [#allocation3], %s253
          %s255 = sand.u32 %s64, 1
          %s256 = smul.addr %s255, 128
          %s257 = scalar_lea.vmem [#allocation2], %s256
          %258 = dma.done %s254, 2048
        $region44: #{_materialize_diag_dense.1} parent=39 // pred_fallthru
          _
      $region40: #{_materialize_diag_dense.1} parent=5 // pred_fallthru
        _
    $region6: #{_materialize_diag_dense.1} parent=1 // loop_footer
      %s14 = sadd.s32 1, %s10
    $region7: #{_materialize_diag_dense.1} parent=1 // loop_footer_branch
      %9 = sbr.rel target = $region3
    $region8: #{_materialize_diag_dense.1} parent=1 // loop_exit
      _
    %259 = vsyncpa [#allocation3], 1
    %s260 = scalar_lea.sflag [#allocation3], 1
    %261 = vsyncpa %s260, 1

</llo_original>
